<compile_context>
chip_gen: v5e
topology: v5e:2x2
jax: 0.10.0
libtpu: 0.0.40
codegen_flags: <defaults>
</compile_context>

<pallas_src>
import functools

import jax
import jax.numpy as jnp
from jax.experimental import pallas as pl
from jax.experimental.pallas import tpu as pltpu


EMB_DIM = 128
REG_COL = EMB_DIM              # regression head lives in column 128 of the fused slab
FUSED_DIM = 256                # triplet path: 128 emb + 1 reg, padded to 2x128 lanes
REG_ONLY_DIM = 128             # triplet=False path: reg head in lane 0 of a 128 slab
F_NORMALIZE_EPS = 1e-12        # matches torch.nn.functional.normalize default
MAX_TILE_B = 512
VMEM_BUDGET_BYTES = 20 << 20   # conservative across v5e(16M default)/v6e(32M)/v7x(32M)


def _round_up(x, m):
    return ((x + m - 1) // m) * m


# ----------------------------- kernels --------------------------------------


def _finalize(fused_f32, out_ref, *, norm_embed):
    """Bias-added f32 slab -> output (optionally L2-normalizing the emb columns)."""
    if norm_embed:
        emb = fused_f32[:, :EMB_DIM]
        sq = jnp.sum(emb * emb, axis=1, keepdims=True)                    # (TB, 1)
        # == emb / max(||emb||, eps): sqrt is monotonic so max commutes; eps^2=1e-24
        # is representable in f32.  rsqrt runs on the EUP slot (idle here).
        inv = jax.lax.rsqrt(jnp.maximum(sq, F_NORMALIZE_EPS * F_NORMALIZE_EPS))
        out_ref[:, :EMB_DIM] = (emb * inv).astype(out_ref.dtype)
        out_ref[:, EMB_DIM:] = fused_f32[:, EMB_DIM:].astype(out_ref.dtype)
    else:
        out_ref[...] = fused_f32.astype(out_ref.dtype)


def _kernel_single_k(x_ref, w_ref, b_ref, out_ref, *, norm_embed, mxu_dtype):
    """Full-C block: one fused MXU matmul for both heads + optional L2 norm."""
    fused = jnp.dot(x_ref[...].astype(mxu_dtype), w_ref[...].astype(mxu_dtype),
                    preferred_element_type=jnp.float32) + b_ref[...]
    _finalize(fused, out_ref, norm_embed=norm_embed)


def _kernel_k_acc(x_ref, w_ref, b_ref, out_ref, acc_ref, *,
                  norm_embed, mxu_dtype, k_rem):
    """K-tiled reduction over C with a resident f32 VMEM accumulator."""
    k = pl.program_id(1)
    nk = pl.num_programs(1)

    @pl.when(k == 0)
    def _():
        acc_ref[...] = jnp.zeros_like(acc_ref)

    x = x_ref[...].astype(mxu_dtype)
    w = w_ref[...].astype(mxu_dtype)
    if k_rem:
        # Ragged last K block: zero the OOB tail in BOTH operands (OOB reads are
        # unspecified and could be NaN; NaN * 0 would still poison the sum).
        limit = jnp.where(k == nk - 1, k_rem, x.shape[1])
        col = jax.lax.broadcasted_iota(jnp.int32, x.shape, 1)
        x = jnp.where(col < limit, x, jnp.zeros_like(x))
        row = jax.lax.broadcasted_iota(jnp.int32, w.shape, 0)
        w = jnp.where(row < limit, w, jnp.zeros_like(w))

    acc_ref[...] += jnp.dot(x, w, preferred_element_type=jnp.float32)

    @pl.when(k == nk - 1)
    def _():
        _finalize(acc_ref[...] + b_ref[...], out_ref, norm_embed=norm_embed)


# ----------------------------- wrapper ---------------------------------------


def fuse_classifier_params(w_cls, b_cls, w_emb=None, b_emb=None, *,
                           triplet=True, dtype=jnp.float32):
    """One-time fusion of the two nn.Linear heads into a lane-dense slab.

    triplet=True : (C, 256) weight; cols [0:128)=emb head, col 128=reg head, rest 0.
    triplet=False: (C, 128) weight; col 0 = reg head, rest 0.
    Bias stays f32 (added after the f32 accumulate).  Call once, reuse per step.
    """
    C = w_cls.shape[0]
    out_dim = FUSED_DIM if triplet else REG_ONLY_DIM
    w_fused = jnp.zeros((C, out_dim), dtype)
    b_fused = jnp.zeros((1, out_dim), jnp.float32)
    if triplet:
        w_fused = w_fused.at[:, :EMB_DIM].set(w_emb.astype(dtype))
        w_fused = w_fused.at[:, REG_COL].set(w_cls[:, 0].astype(dtype))
        b_fused = b_fused.at[:, :EMB_DIM].set(b_emb.astype(jnp.float32))
        b_fused = b_fused.at[:, REG_COL].set(b_cls[0].astype(jnp.float32))
    else:
        w_fused = w_fused.at[:, 0].set(w_cls[:, 0].astype(dtype))
        b_fused = b_fused.at[:, 0].set(b_cls[0].astype(jnp.float32))
    return w_fused, b_fused


def _pick_tile_k(C, tile_b, out_dim, x_itemsize, w_itemsize):
    fixed = 3 * tile_b * out_dim * 4 + 2 * 8 * out_dim * 4   # out dbuf + acc + bias
    per_k = 2 * tile_b * x_itemsize + 2 * out_dim * w_itemsize
    if fixed + C * per_k <= VMEM_BUDGET_BYTES:
        return C
    tk = max(128, ((VMEM_BUDGET_BYTES - fixed) // per_k) // 128 * 128)
    return min(int(tk), C)


def classifier_forward(inputs, w_fused, b_fused, *, triplet=True, norm_embed=True,
                       tile_b=None, tile_k=None, mxu_dtype=None):
    """Fused classifier/embedding forward on pre-fused params.

    inputs  : (B, C) float32 (or bf16)
    w_fused : (C, 256) if triplet else (C, 128)   -- from fuse_classifier_params
    b_fused : (1, 256) or (1, 128) float32
    mxu_dtype: operand dtype for the MXU (f32 accumulate regardless). Pass
               jnp.bfloat16 on v6e/v7x (and v5e) for the fast path.
    """
    B, C = inputs.shape
    out_dim = w_fused.shape[1]
    assert out_dim == (FUSED_DIM if triplet else REG_ONLY_DIM)
    do_norm = bool(triplet and norm_embed)

    if mxu_dtype is None:
        mxu_dtype = jnp.promote_types(inputs.dtype, w_fused.dtype)
    mxu_dtype = jnp.dtype(mxu_dtype)

    # ---- batch tiling: >=2 grid steps when possible (megacore), cap at 512 ----
    if tile_b is None:
        tile_b = min(MAX_TILE_B, _round_up(pl.cdiv(B, 2), 8))
    assert tile_b % 8 == 0, "tile_b must be a multiple of 8 (f32 sublanes)"
    nb = pl.cdiv(B, tile_b)

    # ---- K (channel) tiling sized from a VMEM budget ----
    x_itemsize = jnp.dtype(inputs.dtype).itemsize
    w_itemsize = jnp.dtype(w_fused.dtype).itemsize
    if tile_k is None:
        tile_k = _pick_tile_k(C, tile_b, out_dim, x_itemsize, w_itemsize)
    assert tile_k == C or tile_k % 128 == 0, \
        "tile_k must equal C or be a multiple of 128"
    nk = pl.cdiv(C, tile_k)
    if nk == 1:
        tile_k = C          # full-C block: no OOB reads on the reduction axis
    k_rem = C % tile_k if nk > 1 else 0

    if nk == 1:
        kernel = functools.partial(_kernel_single_k,
                                   norm_embed=do_norm, mxu_dtype=mxu_dtype)
        scratch_shapes = []
    else:
        kernel = functools.partial(_kernel_k_acc, norm_embed=do_norm,
                                   mxu_dtype=mxu_dtype, k_rem=k_rem)
        scratch_shapes = [pltpu.VMEM((tile_b, out_dim), jnp.float32)]

    # ---- explicit scoped-VMEM limit from the actual double-buffered blocks ----
    needed = (2 * tile_b * tile_k * x_itemsize          # x (double-buffered)
              + 2 * tile_k * out_dim * w_itemsize       # fused W
              + 2 * 8 * out_dim * 4                     # bias (sublane-padded)
              + 2 * tile_b * out_dim * 4                # output
              + (tile_b * out_dim * 4 if nk > 1 else 0))  # accumulator scratch
    vmem_limit = min(int(needed * 1.5) + (4 << 20), 64 << 20)

    out = pl.pallas_call(
        kernel,
        out_shape=jax.ShapeDtypeStruct((B, out_dim), jnp.float32),
        grid_spec=pltpu.PrefetchScalarGridSpec(
            num_scalar_prefetch=0,
            grid=(nb, nk),
            in_specs=[
                pl.BlockSpec((tile_b, tile_k), lambda i, k: (i, k)),      # x tile
                pl.BlockSpec((tile_k, out_dim), lambda i, k: (k, 0)),     # fused W
                pl.BlockSpec((1, out_dim), lambda i, k: (0, 0)),          # fused b
            ],
            out_specs=pl.BlockSpec((tile_b, out_dim), lambda i, k: (i, 0)),
            scratch_shapes=scratch_shapes,
        ),
        compiler_params=pltpu.CompilerParams(
            dimension_semantics=("parallel", "arbitrary"),
            vmem_limit_bytes=vmem_limit,
        ),
    )(inputs, w_fused, b_fused)

    if triplet:
        reg = out[:, REG_COL:REG_COL + 1]        # (B, 1)
        emb = out[:, :EMB_DIM]                   # (B, 128)
        return reg, emb
    return out[:, 0:1]                           # (B, 1)


# ----------------------------- reference / init ------------------------------


def init_params(key, input_channel):
    """Deterministic init mimicking nn.Linear's uniform(-1/sqrt(fan_in), 1/sqrt(fan_in))."""
    k1, k2, k3, k4 = jax.random.split(key, 4)
    bound = 1.0 / jnp.sqrt(jnp.float32(input_channel))
    w_cls = jax.random.uniform(k1, (input_channel, 1), jnp.float32, -bound, bound)
    b_cls = jax.random.uniform(k2, (1, 1), jnp.float32, -bound, bound)
    w_emb = jax.random.uniform(k3, (input_channel, EMB_DIM), jnp.float32, -bound, bound)
    b_emb = jax.random.uniform(k4, (1, EMB_DIM), jnp.float32, -bound, bound)
    return w_cls, b_cls, w_emb, b_emb


def _reference(inputs, w_cls, b_cls, w_emb, b_emb, norm_embed=True):
    reg = inputs @ w_cls + b_cls
    emb = inputs @ w_emb + b_emb
    if norm_embed:
        norm = jnp.sqrt(jnp.sum(emb * emb, axis=1, keepdims=True))
        emb = emb / jnp.maximum(norm, F_NORMALIZE_EPS)
    return reg, emb


# ----------------------------- self-test --------------------------------------


if __name__ == "__main__":
    key = jax.random.PRNGKey(0)
    kx, kp, kx2, kp2 = jax.random.split(key, 4)

    B, C = 16, 256   # small shapes consistent with the module (input_channel configurable)
    x = jax.random.normal(kx, (B, C), jnp.float32)
    w_cls, b_cls, w_emb, b_emb = init_params(kp, C)

    # one-time weight fusion (hoisted out of the per-call forward path)
    w_tri, b_tri = fuse_classifier_params(w_cls, b_cls, w_emb, b_emb, triplet=True)
    w_reg, b_reg = fuse_classifier_params(w_cls, b_cls, triplet=False)

    ref_reg, ref_emb = _reference(x, w_cls, b_cls, w_emb, b_emb, norm_embed=True)

    # triplet=True, l2_norm_embed=True path (both heads + normalize), f32 MXU
    reg, emb = classifier_forward(x, w_tri, b_tri, triplet=True, norm_embed=True)
    jax.block_until_ready((reg, emb))
    assert jnp.allclose(reg, ref_reg, atol=1e-4, rtol=1e-4)
    assert jnp.allclose(emb, ref_emb, atol=1e-4, rtol=1e-4)

    # triplet=False fast path (128-wide slab, regression only)
    reg_only = classifier_forward(x, w_reg, b_reg, triplet=False, norm_embed=False)
    jax.block_until_ready(reg_only)
    assert jnp.allclose(reg_only, ref_reg, atol=1e-4, rtol=1e-4)

    # ragged batch (no host-side pad copy; last block handled by the grid)
    xr = x[:12]
    reg_r, emb_r = classifier_forward(xr, w_tri, b_tri, triplet=True, norm_embed=True)
    jax.block_until_ready((reg_r, emb_r))
    assert jnp.allclose(reg_r, ref_reg[:12], atol=1e-4, rtol=1e-4)
    assert jnp.allclose(emb_r, ref_emb[:12], atol=1e-4, rtol=1e-4)

    # K-reduction path with a ragged last K block (C=320, tile_k=128 -> 128/128/64)
    C2 = 320
    x2 = jax.random.normal(kx2, (B, C2), jnp.float32)
    w_cls2, b_cls2, w_emb2, b_emb2 = init_params(kp2, C2)
    w_tri2, b_tri2 = fuse_classifier_params(w_cls2, b_cls2, w_emb2, b_emb2, triplet=True)
    ref_reg2, ref_emb2 = _reference(x2, w_cls2, b_cls2, w_emb2, b_emb2, norm_embed=True)
    reg2, emb2 = classifier_forward(x2, w_tri2, b_tri2, triplet=True, norm_embed=True,
                                    tile_k=128)
    jax.block_until_ready((reg2, emb2))
    assert jnp.allclose(reg2, ref_reg2, atol=1e-4, rtol=1e-4)
    assert jnp.allclose(emb2, ref_emb2, atol=1e-4, rtol=1e-4)

    # bf16 MXU operands (v5e/v6e/v7x fast path), f32 accumulate — loose tolerance
    reg_b, emb_b = classifier_forward(x, w_tri, b_tri, triplet=True, norm_embed=True,
                                      mxu_dtype=jnp.bfloat16)
    jax.block_until_ready((reg_b, emb_b))
    assert jnp.allclose(reg_b, ref_reg, atol=5e-2, rtol=5e-2)
    assert jnp.allclose(emb_b, ref_emb, atol=5e-2, rtol=5e-2)

    print("KERNEL_OK")
</pallas_src>

<mosaic_0001>
module attributes {stable_mosaic.version = 11 : i64} {
  func.func @_kernel_single_k(%arg0: i32, %arg1: i32, %arg2: memref<8x256xf32, #tpu.memory_space<vmem>>, %arg3: memref<256x256xf32, #tpu.memory_space<vmem>>, %arg4: memref<1x256xf32, #tpu.memory_space<vmem>>, %arg5: memref<8x256xf32, #tpu.memory_space<vmem>>) attributes {dimension_semantics = [#tpu.dimension_semantics<parallel>, #tpu.dimension_semantics<arbitrary>], iteration_bounds = array<i64: 2, 1>, scalar_prefetch = 0 : i64, scratch_operands = 0 : i64, tpu.core_type = #tpu.core_type<tc>, window_params = [{transform_indices = @transform_0, window_bounds = array<i64: 8, 256>}, {transform_indices = @transform_1, window_bounds = array<i64: 256, 256>}, {pipeline_mode = #tpu.pipeline_mode<synchronous>, transform_indices = @transform_2, window_bounds = array<i64: 1, 256>}, {transform_indices = @transform_3, window_bounds = array<i64: 8, 256>}]} {
    %c0 = arith.constant 0 : index
    %c0_0 = arith.constant 0 : index
    %0 = vector.load %arg2[%c0, %c0_0] : memref<8x256xf32, #tpu.memory_space<vmem>>, vector<8x256xf32>
    %c0_1 = arith.constant 0 : index
    %c0_2 = arith.constant 0 : index
    %1 = vector.load %arg3[%c0_1, %c0_2] : memref<256x256xf32, #tpu.memory_space<vmem>>, vector<256x256xf32>
    %cst = arith.constant dense<0.000000e+00> : vector<8x256xf32>
    %2 = tpu.matmul %0, %1, %cst {dimension_numbers = #tpu.dot_dimension_numbers<[1], [0], [0], [1], [0, 0, 1, 1], [], []>} : vector<8x256xf32>, vector<256x256xf32>, vector<8x256xf32> -> vector<8x256xf32>
    %c0_3 = arith.constant 0 : index
    %c0_4 = arith.constant 0 : index
    %3 = vector.load %arg4[%c0_3, %c0_4] : memref<1x256xf32, #tpu.memory_space<vmem>>, vector<1x256xf32>
    %4 = vector.broadcast %3 : vector<1x256xf32> to vector<8x256xf32>
    %5 = arith.addf %2, %4 : vector<8x256xf32>
    %6 = vector.extract_strided_slice %5 {offsets = [0, 0], sizes = [8, 128], strides = [1, 1]} : vector<8x256xf32> to vector<8x128xf32>
    %7 = arith.mulf %6, %6 : vector<8x128xf32>
    %cst_5 = arith.constant dense<0.000000e+00> : vector<8xf32>
    %8 = vector.multi_reduction <add>, %7, %cst_5 [1] : vector<8x128xf32> to vector<8xf32>
    %9 = vector.shape_cast %8 : vector<8xf32> to vector<8x1xf32>
    %cst_6 = arith.constant 1.000000e-24 : f32
    %10 = vector.broadcast %cst_6 : f32 to vector<8x1xf32>
    %11 = arith.maximumf %9, %10 : vector<8x1xf32>
    %12 = math.rsqrt %11 : vector<8x1xf32>
    %13 = vector.broadcast %12 : vector<8x1xf32> to vector<8x128xf32>
    %14 = arith.mulf %6, %13 : vector<8x128xf32>
    %c0_7 = arith.constant 0 : index
    %c0_8 = arith.constant 0 : index
    %15 = vector.load %arg5[%c0_7, %c0_8] : memref<8x256xf32, #tpu.memory_space<vmem>>, vector<8x128xf32>
    tpu.vector_store %arg5[%c0_7, %c0_8], %14 {strides = array<i32>} : memref<8x256xf32, #tpu.memory_space<vmem>>, vector<8x128xf32>,
    %16 = vector.extract_strided_slice %5 {offsets = [0, 128], sizes = [8, 128], strides = [1, 1]} : vector<8x256xf32> to vector<8x128xf32>
    %c0_9 = arith.constant 0 : index
    %c128 = arith.constant 128 : index
    %17 = vector.load %arg5[%c0_9, %c128] : memref<8x256xf32, #tpu.memory_space<vmem>>, vector<8x128xf32>
    tpu.vector_store %arg5[%c0_9, %c128], %16 {strides = array<i32>} : memref<8x256xf32, #tpu.memory_space<vmem>>, vector<8x128xf32>,
    return
  }
  func.func @transform_0(%arg0: i32, %arg1: i32) -> (i32, i32) {
    %c0_i32 = arith.constant 0 : i32
    return %arg0, %arg1 : i32, i32
  }
  func.func @transform_1(%arg0: i32, %arg1: i32) -> (i32, i32) {
    %c0_i32 = arith.constant 0 : i32
    %c0_i32_0 = arith.constant 0 : i32
    return %arg1, %c0_i32 : i32, i32
  }
  func.func @transform_2(%arg0: i32, %arg1: i32) -> (i32, i32) {
    %c0_i32 = arith.constant 0 : i32
    %c0_i32_0 = arith.constant 0 : i32
    %c0_i32_1 = arith.constant 0 : i32
    return %c0_i32, %c0_i32_0 : i32, i32
  }
  func.func @transform_3(%arg0: i32, %arg1: i32) -> (i32, i32) {
    %c0_i32 = arith.constant 0 : i32
    %c0_i32_0 = arith.constant 0 : i32
    return %arg0, %c0_i32 : i32, i32
  }
}

</mosaic_0001>

<llo_original>
// kernel: tpu_custom_call.1
$region0: #{tpu_custom_call.1}
  #allocation0 [shape = 'u32[]', space=smem, size = 0x4, offset = 0x4, fixed_abs, tag = 'smem constant byte address 0x4 - core index']
  #allocation1 [shape = 'u32[72,128]{1,0:T(1,128)}', space=vmem, size = 0x9000, scoped, tag = 'internal scratch']
  %s0 = inlined_call_operand.hbm [shape: f32[16,256], index: 0, kind: input, shape index: {}]
  %s1 = inlined_call_operand.hbm [shape: f32[256,256], index: 1, kind: input, shape index: {}]
  %s2 = inlined_call_operand.hbm [shape: f32[1,256], index: 2, kind: input, shape index: {}]
  %s3 = inlined_call_operand.hbm [shape: f32[16,256], index: 3, kind: output, shape index: {}]
  %s4 = sld [smem:[#allocation0]]
  $region57: #{tpu_custom_call.1} parent=0
    _
  %s6 = ssub.s32 1, %s4
  %s7 = scalar_select 0, %s6, %s4
  $region1: #{tpu_custom_call.1} parent=0
    #allocation2 [shape = 'u8[16384]{0}', space=vmem, size = 0x4000, scoped, tag = 'input window, operand 0']
    #allocation3 [shape = 's32[2]{0}', space=sflag, size = 0x8, scoped, tag = 'scoped memory for tpu_custom_call.1']
    #allocation4 [shape = 's32[2]{0}', space=sflag, size = 0x8, scoped, tag = 'scoped memory for tpu_custom_call.1']
    #allocation5 [shape = 'u8[262144]{0}', space=vmem, size = 0x40000, scoped, tag = 'input window, operand 1, single buffered']
    #allocation6 [shape = 's32[1]{0}', space=sflag, size = 0x4, scoped, tag = 'scoped memory for tpu_custom_call.1']
    #allocation7 [shape = 'u8[1024]{0}', space=vmem, size = 0x400, scoped, tag = 'input window, operand 2, single buffered']
    #allocation8 [shape = 'u8[16384]{0}', space=vmem, size = 0x4000, scoped, tag = 'output window, operand 0']
    %8 = vsyncpa [#allocation3], 0
    %s9 = scalar_lea.sflag [#allocation3], 1
    %10 = vsyncpa %s9, 0
    %11 = vsyncpa [#allocation6], 0
    %12 = vsyncpa [#allocation4], 0
    %s13 = scalar_lea.sflag [#allocation4], 1
    %14 = vsyncpa %s13, 0
    loop: start=0, step=1, limit=4
    $region2: #{tpu_custom_call.1} parent=1 // loop_pre_header
      _
    $region3: #{tpu_custom_call.1} parent=1 // loop_header
      %s16 = sphi 0, %s20
      %p17 = scmp.ge.s32.totalorder %s16, 4
      %s23 = sphi 0, %s35
      %s24 = sphi 0, %s31
      %s25 = sphi 0, %s23
      %s26 = sphi 0, %s24
      %s27 = sphi 0, %s25
      %s28 = sphi 0, %s26
      %s40 = sphi 0, %s42
      %s43 = sphi 0, %s40
      %s44 = sphi 0, %s43
      %s60 = sphi 0, %s44
      %s66 = sphi 0, %s68
      %s69 = sphi 0, %s66
      %s70 = sphi 0, %s69
      %s86 = sphi 0, %s70
      %s90 = sphi 0, %s90
      %s92 = sphi 0, %s90
      %s93 = sphi 0, %s92
      %s107 = sphi 0, %s93
      %s113 = sphi 0, %s115
      %s116 = sphi 0, %s113
      %s117 = sphi 0, %s116
      %s133 = sphi 0, %s117
    $region4: #{tpu_custom_call.1} parent=1 // loop_header_branch
      %19 = sbr.rel (%p17) target = $region8
    $region5: #{tpu_custom_call.1} parent=1 // loop_body
      %s21 = ssub.s32 %s16, 1
      %s22 = ssub.s32 %s16, 2
      %s29 = sadd.s32 1, %s24
      %p30 = scmp.ge.s32.totalorder %s29, 1
      %s31 = scalar_select %p30, 0, %s29
      %s32 = sadd.s32 1, %s23
      %s33 = scalar_select %p30, %s32, %s23
      %p34 = scmp.ge.s32.totalorder %s33, 2
      %s35 = scalar_select %p34, 0, %s33
      %s36 = ssub.s32 %s23, %s35
      %s37 = ssub.s32 %s24, %s31
      %s38 = sor.u32 %s36, %s37
      %p39 = scmp.eq.s32.totalorder %s38, 0
      %s41 = sadd.s32 %s40, 1
      %s42 = scalar_select %p39, %s40, %s41
      %p45 = pneg %p39
      %p46 = scmp.eq.s32.totalorder %s16, 1
      %p47 = por %p45, %p46
      %p48 = scmp.ne.s32.totalorder %s40, %s43
      %p49 = scmp.eq.s32.totalorder %s16, 0
      %p50 = por %p48, %p49
      %p51 = scmp.ne.s32.totalorder %s40, %s43
      %p52 = scmp.eq.s32.totalorder %s21, 1
      %p53 = por %p51, %p52
      %p54 = scmp.ne.s32.totalorder %s43, %s44
      %p55 = scmp.eq.s32.totalorder %s21, 0
      %p56 = por %p54, %p55
      %p57 = scmp.ne.s32.totalorder %s43, %s44
      %p58 = scmp.eq.s32.totalorder %s22, 1
      %p59 = por %p57, %p58
      %p61 = scmp.ne.s32.totalorder %s44, %s60
      %p62 = scmp.eq.s32.totalorder %s22, 0
      %p63 = por %p61, %p62
      %s64 = ssub.s32 %s24, %s31
      %p65 = scmp.eq.s32.totalorder %s64, 0
      %s67 = sadd.s32 %s66, 1
      %s68 = scalar_select %p65, %s66, %s67
      %p71 = pneg %p65
      %p72 = scmp.eq.s32.totalorder %s16, 1
      %p73 = por %p71, %p72
      %p74 = scmp.ne.s32.totalorder %s66, %s69
      %p75 = scmp.eq.s32.totalorder %s16, 0
      %p76 = por %p74, %p75
      %p77 = scmp.ne.s32.totalorder %s66, %s69
      %p78 = scmp.eq.s32.totalorder %s21, 1
      %p79 = por %p77, %p78
      %p80 = scmp.ne.s32.totalorder %s69, %s70
      %p81 = scmp.eq.s32.totalorder %s21, 0
      %p82 = por %p80, %p81
      %p83 = scmp.ne.s32.totalorder %s69, %s70
      %p84 = scmp.eq.s32.totalorder %s22, 1
      %p85 = por %p83, %p84
      %p87 = scmp.ne.s32.totalorder %s70, %s86
      %p88 = scmp.eq.s32.totalorder %s22, 0
      %p89 = por %p87, %p88
      %s91 = sadd.s32 %s90, 1
      %p94 = scmp.eq.s32.totalorder %s16, 1
      %p95 = scmp.ne.s32.totalorder %s90, %s92
      %p96 = scmp.eq.s32.totalorder %s16, 0
      %p97 = por %p95, %p96
      %p98 = scmp.ne.s32.totalorder %s90, %s92
      %p99 = scmp.eq.s32.totalorder %s21, 1
      %p100 = por %p98, %p99
      %p101 = scmp.ne.s32.totalorder %s92, %s93
      %p102 = scmp.eq.s32.totalorder %s21, 0
      %p103 = por %p101, %p102
      %p104 = scmp.ne.s32.totalorder %s92, %s93
      %p105 = scmp.eq.s32.totalorder %s22, 1
      %p106 = por %p104, %p105
      %p108 = scmp.ne.s32.totalorder %s93, %s107
      %p109 = scmp.eq.s32.totalorder %s22, 0
      %p110 = por %p108, %p109
      %s111 = ssub.s32 %s23, %s35
      %p112 = scmp.eq.s32.totalorder %s111, 0
      %s114 = sadd.s32 %s113, 1
      %s115 = scalar_select %p112, %s113, %s114
      %p118 = pneg %p112
      %p119 = scmp.eq.s32.totalorder %s16, 1
      %p120 = por %p118, %p119
      %p121 = scmp.ne.s32.totalorder %s113, %s116
      %p122 = scmp.eq.s32.totalorder %s16, 0
      %p123 = por %p121, %p122
      %p124 = scmp.ne.s32.totalorder %s113, %s116
      %p125 = scmp.eq.s32.totalorder %s21, 1
      %p126 = por %p124, %p125
      %p127 = scmp.ne.s32.totalorder %s116, %s117
      %p128 = scmp.eq.s32.totalorder %s21, 0
      %p129 = por %p127, %p128
      %p130 = scmp.ne.s32.totalorder %s116, %s117
      %p131 = scmp.eq.s32.totalorder %s22, 1
      %p132 = por %p130, %p131
      %p134 = scmp.ne.s32.totalorder %s117, %s133
      %p135 = scmp.eq.s32.totalorder %s22, 0
      %p136 = por %p134, %p135
      %p137 = scmp.le.s32.totalorder 1, %s16
      %p138 = scmp.lt.s32.totalorder %s16, 3
      %p139 = pnand %p137, %p138
      %p140 = pneg %p139
      // Predicated region
      $region9: #{tpu_custom_call.1} parent=5 // pred_check
        _
      $region10: #{tpu_custom_call.1} parent=5 // pred_check_branch
        %142 = sbr.rel (%p139) target = $region12
      $region11: #{tpu_custom_call.1} parent=5 // pred_region
        %s143 = ssub.s32 %s16, 1
        // Predicated region
        $region13: #{tpu_custom_call.1} parent=11 // pred_check
          %p144 = pneg %p82
        $region14: #{tpu_custom_call.1} parent=11 // pred_check_branch
          %146 = sbr.rel (%p144) target = $region16
        $region15: #{tpu_custom_call.1} parent=11 // pred_region
          %s147 = smul.u32 32, %s26
          %149 = vsyncadd [#allocation6], 0
          %s150 = smul.addr %s147, 2
          %s151 = smul.addr %s150, 8
          %s152 = scalar_lea.hbm %s1, %s151
          %s153 = sshll.u32 %s152, 4
          %s154 = int_to_ptr.hbm [resolvable:$true] %s153
          %s155 = sshll.u32 [#allocation5], 4
          %s156 = int_to_ptr.vmem [resolvable:$true] %s155
          %161 = dma.hbm_to_vmem [thread:$0]  %s154, 8192, %s156, [#allocation6], 256, 256, 16
        $region16: #{tpu_custom_call.1} parent=11 // pred_fallthru
          _
        // Predicated region
        $region17: #{tpu_custom_call.1} parent=11 // pred_check
          %p162 = pneg %p103
        $region18: #{tpu_custom_call.1} parent=11 // pred_check_branch
          %164 = sbr.rel (%p162) target = $region20
        $region19: #{tpu_custom_call.1} parent=11 // pred_region
          %166 = vsyncadd [#allocation6], 0
          %s168 = sshll.u32 %s2, 4
          %s169 = int_to_ptr.hbm [resolvable:$true] %s168
          %s170 = sshll.u32 [#allocation7], 4
          %s171 = int_to_ptr.vmem [resolvable:$true] %s170
          %173 = dma.hbm_to_vmem [thread:$0]  %s169, 32, %s171, [#allocation6]
        $region20: #{tpu_custom_call.1} parent=11 // pred_fallthru
          _
      $region12: #{tpu_custom_call.1} parent=5 // pred_fallthru
        _
      %p174 = scmp.lt.s32.totalorder %s16, 2
      // Predicated region
      $region21: #{tpu_custom_call.1} parent=5 // pred_check
        %p175 = pneg %p174
      $region22: #{tpu_custom_call.1} parent=5 // pred_check_branch
        %177 = sbr.rel (%p175) target = $region24
      $region23: #{tpu_custom_call.1} parent=5 // pred_region
        // Predicated region
        $region25: #{tpu_custom_call.1} parent=23 // pred_check
          %p178 = pneg %p50
        $region26: #{tpu_custom_call.1} parent=23 // pred_check_branch
          %180 = sbr.rel (%p178) target = $region28
        $region27: #{tpu_custom_call.1} parent=23 // pred_region
          %s181 = sand.u32 %s40, 1
          %s182 = scalar_lea.sflag [#allocation3], %s181
          %s183 = sand.u32 %s40, 1
          %s184 = smul.addr %s183, 16
          %s185 = scalar_lea.vmem [#allocation2], %s184
          %s186 = smul.u32 2, %s24
          %188 = vsyncadd %s182, 0
          %s189 = smul.addr %s23, 2
          %s190 = sadd.s32 %s186, %s189
          %s191 = smul.addr %s190, 8
          %s192 = scalar_lea.hbm %s0, %s191
          %s194 = sshll.u32 %s192, 4
          %s195 = int_to_ptr.hbm [resolvable:$true] %s194
          %s196 = sshll.u32 %s185, 4
          %s197 = int_to_ptr.vmem [resolvable:$true] %s196
          %199 = dma.hbm_to_vmem [thread:$0]  %s195, 256, %s197, %s182
        $region28: #{tpu_custom_call.1} parent=23 // pred_fallthru
          _
      $region24: #{tpu_custom_call.1} parent=5 // pred_fallthru
        _
      %p200 = scmp.le.s32.totalorder 1, %s16
      %p201 = scmp.lt.s32.totalorder %s16, 3
      %p202 = pnand %p200, %p201
      %p203 = pneg %p202
      // Predicated region
      $region29: #{tpu_custom_call.1} parent=5 // pred_check
        _
      $region30: #{tpu_custom_call.1} parent=5 // pred_check_branch
        %205 = sbr.rel (%p202) target = $region32
      $region31: #{tpu_custom_call.1} parent=5 // pred_region
        %s206 = ssub.s32 %s16, 1
        %s207 = sand.u32 %s43, 1
        %s208 = scalar_lea.sflag [#allocation3], %s207
        %s209 = sand.u32 %s43, 1
        %s210 = smul.addr %s209, 16
        %s211 = scalar_lea.vmem [#allocation2], %s210
        // Predicated region
        $region33: #{tpu_custom_call.1} parent=31 // pred_check
          %p212 = pneg %p56
        $region34: #{tpu_custom_call.1} parent=31 // pred_check_branch
          %214 = sbr.rel (%p212) target = $region36
        $region35: #{tpu_custom_call.1} parent=31 // pred_region
          %216 = dma.done %s208, 256
        $region36: #{tpu_custom_call.1} parent=31 // pred_fallthru
          _
        // Predicated region
        $region37: #{tpu_custom_call.1} parent=31 // pred_check
          %p217 = pneg %p82
        $region38: #{tpu_custom_call.1} parent=31 // pred_check_branch
          %219 = sbr.rel (%p217) target = $region40
        $region39: #{tpu_custom_call.1} parent=31 // pred_region
          %221 = dma.done [#allocation6], 8192
        $region40: #{tpu_custom_call.1} parent=31 // pred_fallthru
          _
        // Predicated region
        $region41: #{tpu_custom_call.1} parent=31 // pred_check
          %p222 = pneg %p103
        $region42: #{tpu_custom_call.1} parent=31 // pred_check_branch
          %224 = sbr.rel (%p222) target = $region44
        $region43: #{tpu_custom_call.1} parent=31 // pred_region
          %226 = dma.done [#allocation6], 32
        $region44: #{tpu_custom_call.1} parent=31 // pred_fallthru
          _
        %s227 = sand.u32 %s43, 1
        %s228 = scalar_lea.sflag [#allocation3], %s227
        %s229 = sand.u32 %s43, 1
        %s230 = smul.addr %s229, 16
        %s231 = scalar_lea.vmem [#allocation2], %s230
        %p232 = pneg %p56
        %p233 = pneg %p53
        %p234 = pneg %p82
        %p235 = pneg %p79
        %p236 = pneg %p103
        %p237 = pneg %p100
        %p238 = pneg %p129
        %p239 = pneg %p126
        %s240 = sand.u32 %s116, 1
        %s241 = scalar_lea.sflag [#allocation4], %s240
        %s242 = sand.u32 %s116, 1
        %s243 = smul.addr %s242, 16
        %s244 = scalar_lea.vmem [#allocation8], %s243
        %s245 = smul.u32 2, %s26
        %s246 = smul.u32 32, %s26
        %v247 = vld [vmem:[%s211] sm:$0xff]
        %v248 = vld [vmem:[%s211 + $0x8] sm:$0xff]
        %v249 = vld [vmem:[#allocation5] sm:$0xff]
        %v250 = vld [vmem:[#allocation5 + $0x8] sm:$0xff]
        %v251 = vld [vmem:[#allocation5 + $0x10] sm:$0xff]
        %v252 = vld [vmem:[#allocation5 + $0x18] sm:$0xff]
        %v253 = vld [vmem:[#allocation5 + $0x20] sm:$0xff]
        %v254 = vld [vmem:[#allocation5 + $0x28] sm:$0xff]
        %v255 = vld [vmem:[#allocation5 + $0x30] sm:$0xff]
        %v256 = vld [vmem:[#allocation5 + $0x38] sm:$0xff]
        %v257 = vld [vmem:[#allocation5 + $0x40] sm:$0xff]
        %v258 = vld [vmem:[#allocation5 + $0x48] sm:$0xff]
        %v259 = vld [vmem:[#allocation5 + $0x50] sm:$0xff]
        %v260 = vld [vmem:[#allocation5 + $0x58] sm:$0xff]
        %v261 = vld [vmem:[#allocation5 + $0x60] sm:$0xff]
        %v262 = vld [vmem:[#allocation5 + $0x68] sm:$0xff]
        %v263 = vld [vmem:[#allocation5 + $0x70] sm:$0xff]
        %v264 = vld [vmem:[#allocation5 + $0x78] sm:$0xff]
        %v265 = vld [vmem:[#allocation5 + $0x80] sm:$0xff]
        %v266 = vld [vmem:[#allocation5 + $0x88] sm:$0xff]
        %v267 = vld [vmem:[#allocation5 + $0x90] sm:$0xff]
        %v268 = vld [vmem:[#allocation5 + $0x98] sm:$0xff]
        %v269 = vld [vmem:[#allocation5 + $0xa0] sm:$0xff]
        %v270 = vld [vmem:[#allocation5 + $0xa8] sm:$0xff]
        %v271 = vld [vmem:[#allocation5 + $0xb0] sm:$0xff]
        %v272 = vld [vmem:[#allocation5 + $0xb8] sm:$0xff]
        %v273 = vld [vmem:[#allocation5 + $0xc0] sm:$0xff]
        %v274 = vld [vmem:[#allocation5 + $0xc8] sm:$0xff]
        %v275 = vld [vmem:[#allocation5 + $0xd0] sm:$0xff]
        %v276 = vld [vmem:[#allocation5 + $0xd8] sm:$0xff]
        %v277 = vld [vmem:[#allocation5 + $0xe0] sm:$0xff]
        %v278 = vld [vmem:[#allocation5 + $0xe8] sm:$0xff]
        %v279 = vld [vmem:[#allocation5 + $0xf0] sm:$0xff]
        %v280 = vld [vmem:[#allocation5 + $0xf8] sm:$0xff]
        %v281 = vld [vmem:[#allocation5 + $0x100] sm:$0xff]
        %v282 = vld [vmem:[#allocation5 + $0x108] sm:$0xff]
        %v283 = vld [vmem:[#allocation5 + $0x110] sm:$0xff]
        %v284 = vld [vmem:[#allocation5 + $0x118] sm:$0xff]
        %v285 = vld [vmem:[#allocation5 + $0x120] sm:$0xff]
        %v286 = vld [vmem:[#allocation5 + $0x128] sm:$0xff]
        %v287 = vld [vmem:[#allocation5 + $0x130] sm:$0xff]
        %v288 = vld [vmem:[#allocation5 + $0x138] sm:$0xff]
        %v289 = vld [vmem:[#allocation5 + $0x140] sm:$0xff]
        %v290 = vld [vmem:[#allocation5 + $0x148] sm:$0xff]
        %v291 = vld [vmem:[#allocation5 + $0x150] sm:$0xff]
        %v292 = vld [vmem:[#allocation5 + $0x158] sm:$0xff]
        %v293 = vld [vmem:[#allocation5 + $0x160] sm:$0xff]
        %v294 = vld [vmem:[#allocation5 + $0x168] sm:$0xff]
        %v295 = vld [vmem:[#allocation5 + $0x170] sm:$0xff]
        %v296 = vld [vmem:[#allocation5 + $0x178] sm:$0xff]
        %v297 = vld [vmem:[#allocation5 + $0x180] sm:$0xff]
        %v298 = vld [vmem:[#allocation5 + $0x188] sm:$0xff]
        %v299 = vld [vmem:[#allocation5 + $0x190] sm:$0xff]
        %v300 = vld [vmem:[#allocation5 + $0x198] sm:$0xff]
        %v301 = vld [vmem:[#allocation5 + $0x1a0] sm:$0xff]
        %v302 = vld [vmem:[#allocation5 + $0x1a8] sm:$0xff]
        %v303 = vld [vmem:[#allocation5 + $0x1b0] sm:$0xff]
        %v304 = vld [vmem:[#allocation5 + $0x1b8] sm:$0xff]
        %v305 = vld [vmem:[#allocation5 + $0x1c0] sm:$0xff]
        %v306 = vld [vmem:[#allocation5 + $0x1c8] sm:$0xff]
        %v307 = vld [vmem:[#allocation5 + $0x1d0] sm:$0xff]
        %v308 = vld [vmem:[#allocation5 + $0x1d8] sm:$0xff]
        %v309 = vld [vmem:[#allocation5 + $0x1e0] sm:$0xff]
        %v310 = vld [vmem:[#allocation5 + $0x1e8] sm:$0xff]
        %v311 = vld [vmem:[#allocation5 + $0x1f0] sm:$0xff]
        %v312 = vld [vmem:[#allocation5 + $0x1f8] sm:$0xff]
        %v313 = vld [vmem:[#allocation7] sm:$0x3]
        %v315 = vperm.slane %v313, 0
        %v316 = vperm.slane %v313, 1
        %319 = vmatpush.msra.mxu0 %v279
        %320 = vmatpush.msra.mxu0 %v277
        %321 = vmatpush.msra.mxu0 %v275
        %322 = vmatpush.msra.mxu0 %v273
        %323 = vmatpush.msra.mxu0 %v271
        %324 = vmatpush.msra.mxu0 %v269
        %325 = vmatpush.msra.mxu0 %v267
        %326 = vmatpush.msra.mxu0 %v265
        %327 = vmatpush.msra.mxu0 %v263
        %328 = vmatpush.msra.mxu0 %v261
        %329 = vmatpush.msra.mxu0 %v259
        %330 = vmatpush.msra.mxu0 %v257
        %331 = vmatpush.msra.mxu0 %v255
        %332 = vmatpush.msra.mxu0 %v253
        %333 = vmatpush.msra.mxu0 %v251
        %334 = vmatpush.msra.mxu0 %v249
        %335 = vmatmul.f32.gmra.mxu0 %v247
        %v336 = vpop.f32.mrf.mxu0
        %v337 = vadd.f32 %v315, %v336
        %338 = vdwg.mxu0
        %339 = vmatpush.msra.mxu0 %v311
        %340 = vmatpush.msra.mxu0 %v309
        %341 = vmatpush.msra.mxu0 %v307
        %342 = vmatpush.msra.mxu0 %v305
        %343 = vmatpush.msra.mxu0 %v303
        %344 = vmatpush.msra.mxu0 %v301
        %345 = vmatpush.msra.mxu0 %v299
        %346 = vmatpush.msra.mxu0 %v297
        %347 = vmatpush.msra.mxu0 %v295
        %348 = vmatpush.msra.mxu0 %v293
        %349 = vmatpush.msra.mxu0 %v291
        %350 = vmatpush.msra.mxu0 %v289
        %351 = vmatpush.msra.mxu0 %v287
        %352 = vmatpush.msra.mxu0 %v285
        %353 = vmatpush.msra.mxu0 %v283
        %354 = vmatpush.msra.mxu0 %v281
        %355 = vmatmul.f32.gmra.mxu0 %v248
        %v356 = vpop.f32.mrf.mxu0
        %v357 = vadd.f32 %v337, %v356
        %358 = vdwg.mxu0
        %359 = vmatpush.msra.mxu0 %v280
        %360 = vmatpush.msra.mxu0 %v278
        %361 = vmatpush.msra.mxu0 %v276
        %362 = vmatpush.msra.mxu0 %v274
        %363 = vmatpush.msra.mxu0 %v272
        %364 = vmatpush.msra.mxu0 %v270
        %365 = vmatpush.msra.mxu0 %v268
        %366 = vmatpush.msra.mxu0 %v266
        %367 = vmatpush.msra.mxu0 %v264
        %368 = vmatpush.msra.mxu0 %v262
        %369 = vmatpush.msra.mxu0 %v260
        %370 = vmatpush.msra.mxu0 %v258
        %371 = vmatpush.msra.mxu0 %v256
        %372 = vmatpush.msra.mxu0 %v254
        %373 = vmatpush.msra.mxu0 %v252
        %374 = vmatpush.msra.mxu0 %v250
        %375 = vmatmul.f32.gmra.mxu0 %v247
        %v376 = vpop.f32.mrf.mxu0
        %v377 = vadd.f32 %v316, %v376
        %378 = vdwg.mxu0
        %379 = vmatpush.msra.mxu0 %v312
        %380 = vmatpush.msra.mxu0 %v310
        %381 = vmatpush.msra.mxu0 %v308
        %382 = vmatpush.msra.mxu0 %v306
        %383 = vmatpush.msra.mxu0 %v304
        %384 = vmatpush.msra.mxu0 %v302
        %385 = vmatpush.msra.mxu0 %v300
        %386 = vmatpush.msra.mxu0 %v298
        %387 = vmatpush.msra.mxu0 %v296
        %388 = vmatpush.msra.mxu0 %v294
        %389 = vmatpush.msra.mxu0 %v292
        %390 = vmatpush.msra.mxu0 %v290
        %391 = vmatpush.msra.mxu0 %v288
        %392 = vmatpush.msra.mxu0 %v286
        %393 = vmatpush.msra.mxu0 %v284
        %394 = vmatpush.msra.mxu0 %v282
        %395 = vmatmul.f32.gmra.mxu0 %v248
        %v396 = vpop.f32.mrf.mxu0
        %v397 = vadd.f32 %v377, %v396
        %398 = vdwg.mxu0
        %v399 = vmul.f32 %v357, %v357
        %400 = vadd.xlane.f32.xlu0 %v399
        %v401 = vpop.xlane.xlu0 %400
        %v402 = vmax.f32 %v401, 1e-24
        %v403 = vrsqrt.pop %v402
        %v404 = vmul.f32 %v403, %v402
        %v405 = vmul.f32 %v404, %v403
        %v406 = vmul.f32 0.5, %v405
        %v407 = vsub.f32 1.5, %v406
        %v408 = vmul.f32 %v403, %v407
        %vm409 = vweird.f32 %v402
        %vm410 = vweird.f32 %v403
        %vm411 = vmor %vm409, %vm410
        %v412 = vsel %vm411, %v403, %v408
        %v413 = vmul.f32 %v357, %v412
        %414 = vst [vmem:[%s244] sm:$0xff] %v413
        %415 = vst [vmem:[%s244 + $0x8] sm:$0xff] %v397
        %s416 = sand.u32 %s116, 1
        %s417 = scalar_lea.sflag [#allocation4], %s416
        %s418 = sand.u32 %s116, 1
        %s419 = smul.addr %s418, 16
        %s420 = scalar_lea.vmem [#allocation8], %s419
        // Predicated region
        $region45: #{tpu_custom_call.1} parent=31 // pred_check
          %p421 = pneg %p126
        $region46: #{tpu_custom_call.1} parent=31 // pred_check_branch
          %423 = sbr.rel (%p421) target = $region48
        $region47: #{tpu_custom_call.1} parent=31 // pred_region
          %425 = vsyncadd %s417, 0
          %s426 = smul.addr %s25, 2
          %s427 = smul.addr %s426, 8
          %s428 = scalar_lea.hbm %s3, %s427
          %s430 = sshll.u32 %s420, 4
          %s431 = int_to_ptr.vmem [resolvable:$true] %s430
          %s432 = sshll.u32 %s428, 4
          %s433 = int_to_ptr.hbm [resolvable:$true] %s432
          %435 = dma.vmem_to_hbm [thread:$0]  %s431, 256, %s433, %s417
        $region48: #{tpu_custom_call.1} parent=31 // pred_fallthru
          _
      $region32: #{tpu_custom_call.1} parent=5 // pred_fallthru
        _
      %p436 = scmp.le.s32.totalorder 2, %s16
      // Predicated region
      $region49: #{tpu_custom_call.1} parent=5 // pred_check
        %p437 = pneg %p436
      $region50: #{tpu_custom_call.1} parent=5 // pred_check_branch
        %439 = sbr.rel (%p437) target = $region52
      $region51: #{tpu_custom_call.1} parent=5 // pred_region
        %s440 = ssub.s32 %s16, 2
        // Predicated region
        $region53: #{tpu_custom_call.1} parent=51 // pred_check
          %p441 = pneg %p132
        $region54: #{tpu_custom_call.1} parent=51 // pred_check_branch
          %443 = sbr.rel (%p441) target = $region56
        $region55: #{tpu_custom_call.1} parent=51 // pred_region
          %s444 = sand.u32 %s117, 1
          %s445 = scalar_lea.sflag [#allocation4], %s444
          %s446 = sand.u32 %s117, 1
          %s447 = smul.addr %s446, 16
          %s448 = scalar_lea.vmem [#allocation8], %s447
          %450 = dma.done %s445, 256
        $region56: #{tpu_custom_call.1} parent=51 // pred_fallthru
          _
      $region52: #{tpu_custom_call.1} parent=5 // pred_fallthru
        _
    $region6: #{tpu_custom_call.1} parent=1 // loop_footer
      %s20 = sadd.s32 1, %s16
    $region7: #{tpu_custom_call.1} parent=1 // loop_footer_branch
      %15 = sbr.rel target = $region3
    $region8: #{tpu_custom_call.1} parent=1 // loop_exit
      _
    %451 = vsyncpa [#allocation3], 1
    %s452 = scalar_lea.sflag [#allocation3], 1
    %453 = vsyncpa %s452, 1
    %454 = vsyncpa [#allocation6], 1
    %455 = vsyncpa [#allocation4], 1
    %s456 = scalar_lea.sflag [#allocation4], 1
    %457 = vsyncpa %s456, 1

</llo_original>
